<compile_context>
chip_gen: v5e
topology: v5e:2x2
jax: 0.10.0
libtpu: 0.0.40
codegen_flags: <defaults>
</compile_context>

<pallas_src>
import math

import jax
import jax.numpy as jnp
from jax.experimental import pallas as pl
from jax.experimental.pallas import tpu as pltpu

EPS = 1e-6
LANES = 128
SUBLANES = 8


def _iou_kernel(pred_ref, tgt_ref, out_ref, inter_acc, psum_acc, tsum_acc):
    # grid = (N, num_row_blocks); axis 1 is the serial reduction axis.
    k = pl.program_id(1)

    @pl.when(k == 0)
    def _():
        inter_acc[...] = jnp.zeros_like(inter_acc)
        psum_acc[...] = jnp.zeros_like(psum_acc)
        tsum_acc[...] = jnp.zeros_like(tsum_acc)

    p = pred_ref[...].astype(jnp.float32)   # (block_rows, 128), lane-dense
    t = tgt_ref[...].astype(jnp.float32)

    r = p.shape[0] // SUBLANES
    pr = p.reshape(r, SUBLANES, LANES)      # tile-aligned reshape (free)
    tr = t.reshape(r, SUBLANES, LANES)

    # Elementwise accumulation into (8, 128) accumulators: pure VPU adds in the
    # hot loop; the expensive cross-lane reduction is deferred to finalize.
    inter_acc[...] += jnp.sum(pr * tr, axis=0)
    psum_acc[...] += jnp.sum(pr, axis=0)
    tsum_acc[...] += jnp.sum(tr, axis=0)

    @pl.when(k == pl.num_programs(1) - 1)
    def _():
        inter = jnp.sum(inter_acc[...])
        union = jnp.sum(psum_acc[...]) + jnp.sum(tsum_acc[...]) - inter
        loss = 1.0 - inter / (union + EPS)
        # Lane-dense (1, 128) store; wrapper reads lane 0.
        out_ref[...] = jnp.full(out_ref.shape, loss, dtype=out_ref.dtype)


def iou_loss(pred, target, *, max_block_rows=2048):
    """pred, target: (N, ...) arrays (e.g. NCHW). Returns scalar mean IoU loss."""
    N = pred.shape[0]
    D = math.prod(pred.shape[1:])

    p = pred.reshape(N, D)
    t = target.reshape(N, D)

    # Lane-dense per-sample layout: (rows, 128), rows a multiple of 8, split
    # into `num_blocks` reduction steps of `block_rows` rows each.
    rows = pl.cdiv(D, LANES)
    num_blocks = pl.cdiv(rows, max_block_rows)
    block_rows = pl.cdiv(rows, num_blocks)
    block_rows = ((block_rows + SUBLANES - 1) // SUBLANES) * SUBLANES
    rows_padded = num_blocks * block_rows
    d_padded = rows_padded * LANES

    if d_padded != D:
        # Zero padding leaves inter / sum(pred) / sum(target) unchanged.
        pad = d_padded - D
        p = jnp.pad(p, ((0, 0), (0, pad)))
        t = jnp.pad(t, ((0, 0), (0, pad)))

    p3 = p.reshape(N, rows_padded, LANES)
    t3 = t.reshape(N, rows_padded, LANES)

    per_sample = pl.pallas_call(
        _iou_kernel,
        out_shape=jax.ShapeDtypeStruct((N, 1, LANES), jnp.float32),
        grid_spec=pltpu.PrefetchScalarGridSpec(
            num_scalar_prefetch=0,
            grid=(N, num_blocks),
            in_specs=[
                pl.BlockSpec((None, block_rows, LANES), lambda n, k: (n, k, 0)),
                pl.BlockSpec((None, block_rows, LANES), lambda n, k: (n, k, 0)),
            ],
            out_specs=pl.BlockSpec((None, 1, LANES), lambda n, k: (n, 0, 0)),
            scratch_shapes=[
                pltpu.VMEM((SUBLANES, LANES), jnp.float32),
                pltpu.VMEM((SUBLANES, LANES), jnp.float32),
                pltpu.VMEM((SUBLANES, LANES), jnp.float32),
            ],
        ),
        compiler_params=pltpu.CompilerParams(
            # Batch axis can be sharded across TensorCores (v7x megacore);
            # the row-block axis is a serial reduction into VMEM accumulators.
            dimension_semantics=("parallel", "arbitrary"),
        ),
    )(p3, t3)

    # Tiny (N,)-element mean kept outside the kernel so the batch axis can stay
    # "parallel" (a shared cross-batch accumulator would be wrong when the grid
    # is sharded across cores).
    return jnp.mean(per_sample[:, 0, 0])


def _reference(pred, target):
    N = pred.shape[0]
    p = pred.reshape(N, -1).astype(jnp.float32)
    t = target.reshape(N, -1).astype(jnp.float32)
    inter = jnp.sum(p * t, axis=-1)
    union = jnp.sum(p, axis=-1) + jnp.sum(t, axis=-1) - inter
    return jnp.mean(1.0 - inter / (union + EPS))


if __name__ == "__main__":
    key = jax.random.PRNGKey(0)
    k1, k2 = jax.random.split(key)
    N, C, H, W = 2, 4, 16, 16   # D = 1024
    pred = jax.nn.sigmoid(jax.random.normal(k1, (N, C, H, W), dtype=jnp.float32))
    target = (jax.random.uniform(k2, (N, C, H, W)) > 0.5).astype(jnp.float32)

    loss = jax.block_until_ready(iou_loss(pred, target))
    ref = jax.block_until_ready(_reference(pred, target))

    assert jnp.allclose(loss, ref, atol=1e-5, rtol=1e-5), (loss, ref)
    print("KERNEL_OK")
</pallas_src>

<mosaic_0001>
module attributes {stable_mosaic.version = 11 : i64} {
  func.func @_iou_kernel(%arg0: i32, %arg1: i32, %arg2: memref<1x8x128xf32, #tpu.memory_space<vmem>>, %arg3: memref<1x8x128xf32, #tpu.memory_space<vmem>>, %arg4: memref<1x1x128xf32, #tpu.memory_space<vmem>>, %arg5: memref<8x128xf32, #tpu.memory_space<vmem>>, %arg6: memref<8x128xf32, #tpu.memory_space<vmem>>, %arg7: memref<8x128xf32, #tpu.memory_space<vmem>>) attributes {dimension_semantics = [#tpu.dimension_semantics<parallel>, #tpu.dimension_semantics<arbitrary>], iteration_bounds = array<i64: 2, 1>, scalar_prefetch = 0 : i64, scratch_operands = 3 : i64, tpu.core_type = #tpu.core_type<tc>, window_params = [{transform_indices = @transform_0, window_bounds = array<i64: 1, 8, 128>}, {transform_indices = @transform_1, window_bounds = array<i64: 1, 8, 128>}, {transform_indices = @transform_2, window_bounds = array<i64: 1, 1, 128>}]} {
    %c0_i32 = arith.constant 0 : i32
    %0 = arith.cmpi eq, %arg1, %c0_i32 : i32
    %1 = arith.extui %0 : i1 to i32
    %c0_i32_0 = arith.constant 0 : i32
    %2 = arith.cmpi ne, %1, %c0_i32_0 : i32
    scf.if %2 {
      %cst_22 = arith.constant 0.000000e+00 : f32
      %25 = vector.broadcast %cst_22 : f32 to vector<8x128xf32>
      %c0_23 = arith.constant 0 : index
      %c0_24 = arith.constant 0 : index
      %26 = vector.load %arg5[%c0_23, %c0_24] : memref<8x128xf32, #tpu.memory_space<vmem>>, vector<8x128xf32>
      tpu.vector_store %arg5[%c0_23, %c0_24], %25 {strides = array<i32>} : memref<8x128xf32, #tpu.memory_space<vmem>>, vector<8x128xf32>,
      %cst_25 = arith.constant 0.000000e+00 : f32
      %27 = vector.broadcast %cst_25 : f32 to vector<8x128xf32>
      %c0_26 = arith.constant 0 : index
      %c0_27 = arith.constant 0 : index
      %28 = vector.load %arg6[%c0_26, %c0_27] : memref<8x128xf32, #tpu.memory_space<vmem>>, vector<8x128xf32>
      tpu.vector_store %arg6[%c0_26, %c0_27], %27 {strides = array<i32>} : memref<8x128xf32, #tpu.memory_space<vmem>>, vector<8x128xf32>,
      %cst_28 = arith.constant 0.000000e+00 : f32
      %29 = vector.broadcast %cst_28 : f32 to vector<8x128xf32>
      %c0_29 = arith.constant 0 : index
      %c0_30 = arith.constant 0 : index
      %30 = vector.load %arg7[%c0_29, %c0_30] : memref<8x128xf32, #tpu.memory_space<vmem>>, vector<8x128xf32>
      tpu.vector_store %arg7[%c0_29, %c0_30], %29 {strides = array<i32>} : memref<8x128xf32, #tpu.memory_space<vmem>>, vector<8x128xf32>,
    } else {
    }
    %c0 = arith.constant 0 : index
    %c0_1 = arith.constant 0 : index
    %c0_2 = arith.constant 0 : index
    %3 = vector.load %arg2[%c0, %c0_1, %c0_2] : memref<1x8x128xf32, #tpu.memory_space<vmem>>, vector<1x8x128xf32>
    %4 = vector.shape_cast %3 : vector<1x8x128xf32> to vector<8x128xf32>
    %c0_3 = arith.constant 0 : index
    %c0_4 = arith.constant 0 : index
    %c0_5 = arith.constant 0 : index
    %5 = vector.load %arg3[%c0_3, %c0_4, %c0_5] : memref<1x8x128xf32, #tpu.memory_space<vmem>>, vector<1x8x128xf32>
    %6 = vector.shape_cast %5 : vector<1x8x128xf32> to vector<8x128xf32>
    %7 = vector.shape_cast %4 : vector<8x128xf32> to vector<1x8x128xf32>
    %8 = vector.shape_cast %6 : vector<8x128xf32> to vector<1x8x128xf32>
    %c0_6 = arith.constant 0 : index
    %c0_7 = arith.constant 0 : index
    %9 = vector.load %arg5[%c0_6, %c0_7] : memref<8x128xf32, #tpu.memory_space<vmem>>, vector<8x128xf32>
    %10 = arith.mulf %7, %8 : vector<1x8x128xf32>
    %cst = arith.constant dense<0.000000e+00> : vector<8x128xf32>
    %11 = vector.multi_reduction <add>, %10, %cst [0] : vector<1x8x128xf32> to vector<8x128xf32>
    %12 = arith.addf %9, %11 : vector<8x128xf32>
    %c0_8 = arith.constant 0 : index
    %c0_9 = arith.constant 0 : index
    %13 = vector.load %arg5[%c0_8, %c0_9] : memref<8x128xf32, #tpu.memory_space<vmem>>, vector<8x128xf32>
    tpu.vector_store %arg5[%c0_8, %c0_9], %12 {strides = array<i32>} : memref<8x128xf32, #tpu.memory_space<vmem>>, vector<8x128xf32>,
    %c0_10 = arith.constant 0 : index
    %c0_11 = arith.constant 0 : index
    %14 = vector.load %arg6[%c0_10, %c0_11] : memref<8x128xf32, #tpu.memory_space<vmem>>, vector<8x128xf32>
    %cst_12 = arith.constant dense<0.000000e+00> : vector<8x128xf32>
    %15 = vector.multi_reduction <add>, %7, %cst_12 [0] : vector<1x8x128xf32> to vector<8x128xf32>
    %16 = arith.addf %14, %15 : vector<8x128xf32>
    %c0_13 = arith.constant 0 : index
    %c0_14 = arith.constant 0 : index
    %17 = vector.load %arg6[%c0_13, %c0_14] : memref<8x128xf32, #tpu.memory_space<vmem>>, vector<8x128xf32>
    tpu.vector_store %arg6[%c0_13, %c0_14], %16 {strides = array<i32>} : memref<8x128xf32, #tpu.memory_space<vmem>>, vector<8x128xf32>,
    %c0_15 = arith.constant 0 : index
    %c0_16 = arith.constant 0 : index
    %18 = vector.load %arg7[%c0_15, %c0_16] : memref<8x128xf32, #tpu.memory_space<vmem>>, vector<8x128xf32>
    %cst_17 = arith.constant dense<0.000000e+00> : vector<8x128xf32>
    %19 = vector.multi_reduction <add>, %8, %cst_17 [0] : vector<1x8x128xf32> to vector<8x128xf32>
    %20 = arith.addf %18, %19 : vector<8x128xf32>
    %c0_18 = arith.constant 0 : index
    %c0_19 = arith.constant 0 : index
    %21 = vector.load %arg7[%c0_18, %c0_19] : memref<8x128xf32, #tpu.memory_space<vmem>>, vector<8x128xf32>
    tpu.vector_store %arg7[%c0_18, %c0_19], %20 {strides = array<i32>} : memref<8x128xf32, #tpu.memory_space<vmem>>, vector<8x128xf32>,
    %c0_i32_20 = arith.constant 0 : i32
    %22 = arith.cmpi eq, %arg1, %c0_i32_20 : i32
    %23 = arith.extui %22 : i1 to i32
    %c0_i32_21 = arith.constant 0 : i32
    %24 = arith.cmpi ne, %23, %c0_i32_21 : i32
    scf.if %24 {
      %c0_22 = arith.constant 0 : index
      %c0_23 = arith.constant 0 : index
      %25 = vector.load %arg5[%c0_22, %c0_23] : memref<8x128xf32, #tpu.memory_space<vmem>>, vector<8x128xf32>
      %26 = vector.shape_cast %25 : vector<8x128xf32> to vector<1x8x128xf32>
      %cst_24 = arith.constant dense<0.000000e+00> : vector<1xf32>
      %27 = vector.multi_reduction <add>, %26, %cst_24 [1, 2] : vector<1x8x128xf32> to vector<1xf32>
      %28 = vector.shape_cast %27 : vector<1xf32> to vector<1x1x1xf32>
      %29 = vector.extract %28[0, 0, 0] : f32 from vector<1x1x1xf32>
      %c0_25 = arith.constant 0 : index
      %c0_26 = arith.constant 0 : index
      %30 = vector.load %arg6[%c0_25, %c0_26] : memref<8x128xf32, #tpu.memory_space<vmem>>, vector<8x128xf32>
      %31 = vector.shape_cast %30 : vector<8x128xf32> to vector<1x8x128xf32>
      %cst_27 = arith.constant dense<0.000000e+00> : vector<1xf32>
      %32 = vector.multi_reduction <add>, %31, %cst_27 [1, 2] : vector<1x8x128xf32> to vector<1xf32>
      %33 = vector.shape_cast %32 : vector<1xf32> to vector<1x1x1xf32>
      %34 = vector.extract %33[0, 0, 0] : f32 from vector<1x1x1xf32>
      %c0_28 = arith.constant 0 : index
      %c0_29 = arith.constant 0 : index
      %35 = vector.load %arg7[%c0_28, %c0_29] : memref<8x128xf32, #tpu.memory_space<vmem>>, vector<8x128xf32>
      %36 = vector.shape_cast %35 : vector<8x128xf32> to vector<1x8x128xf32>
      %cst_30 = arith.constant dense<0.000000e+00> : vector<1xf32>
      %37 = vector.multi_reduction <add>, %36, %cst_30 [1, 2] : vector<1x8x128xf32> to vector<1xf32>
      %38 = vector.shape_cast %37 : vector<1xf32> to vector<1x1x1xf32>
      %39 = vector.extract %38[0, 0, 0] : f32 from vector<1x1x1xf32>
      %40 = arith.addf %34, %39 : f32
      %41 = arith.subf %40, %29 : f32
      %cst_31 = arith.constant 9.99999997E-7 : f32
      %42 = arith.addf %41, %cst_31 : f32
      %43 = arith.divf %29, %42 : f32
      %cst_32 = arith.constant 1.000000e+00 : f32
      %44 = arith.subf %cst_32, %43 : f32
      %45 = vector.broadcast %44 : f32 to vector<1x128xf32>
      %c0_33 = arith.constant 0 : index
      %c0_34 = arith.constant 0 : index
      %c0_35 = arith.constant 0 : index
      %46 = vector.load %arg4[%c0_33, %c0_34, %c0_35] : memref<1x1x128xf32, #tpu.memory_space<vmem>>, vector<1x1x128xf32>
      %47 = vector.shape_cast %46 : vector<1x1x128xf32> to vector<1x128xf32>
      %48 = vector.shape_cast %45 : vector<1x128xf32> to vector<1x1x128xf32>
      tpu.vector_store %arg4[%c0_33, %c0_34, %c0_35], %48 {strides = array<i32>} : memref<1x1x128xf32, #tpu.memory_space<vmem>>, vector<1x1x128xf32>,
    } else {
    }
    return
  }
  func.func @transform_0(%arg0: i32, %arg1: i32) -> (i32, i32, i32) {
    %c0_i32 = arith.constant 0 : i32
    %c0_i32_0 = arith.constant 0 : i32
    return %arg0, %arg1, %c0_i32 : i32, i32, i32
  }
  func.func @transform_1(%arg0: i32, %arg1: i32) -> (i32, i32, i32) {
    %c0_i32 = arith.constant 0 : i32
    %c0_i32_0 = arith.constant 0 : i32
    return %arg0, %arg1, %c0_i32 : i32, i32, i32
  }
  func.func @transform_2(%arg0: i32, %arg1: i32) -> (i32, i32, i32) {
    %c0_i32 = arith.constant 0 : i32
    %c0_i32_0 = arith.constant 0 : i32
    %c0_i32_1 = arith.constant 0 : i32
    return %arg0, %c0_i32, %c0_i32_0 : i32, i32, i32
  }
}

</mosaic_0001>

<llo_original>
// kernel: tpu_custom_call.1
$region0: #{tpu_custom_call.1}
  #allocation0 [shape = 'u32[]', space=smem, size = 0x4, offset = 0x4, fixed_abs, tag = 'smem constant byte address 0x4 - core index']
  #allocation1 [shape = 'u32[72,128]{1,0:T(1,128)}', space=vmem, size = 0x9000, scoped, tag = 'internal scratch']
  #allocation2 [shape = 'f32[8,128]{1,0:T(8,128)}', space=vmem, size = 0x1000, scoped, tag = 'scratch operand']
  #allocation3 [shape = 'f32[8,128]{1,0:T(8,128)}', space=vmem, size = 0x1000, scoped, tag = 'scratch operand']
  #allocation4 [shape = 'f32[8,128]{1,0:T(8,128)}', space=vmem, size = 0x1000, scoped, tag = 'scratch operand']
  %s0 = inlined_call_operand.hbm [shape: f32[2,8,128], index: 0, kind: input, shape index: {}]
  %s1 = inlined_call_operand.hbm [shape: f32[2,8,128], index: 1, kind: input, shape index: {}]
  %s2 = inlined_call_operand.hbm [shape: f32[2,1,128], index: 2, kind: output, shape index: {}]
  %s3 = sld [smem:[#allocation0]]
  $region57: #{tpu_custom_call.1} parent=0
    _
  %s5 = ssub.s32 1, %s3
  %s6 = scalar_select 0, %s5, %s3
  $region1: #{tpu_custom_call.1} parent=0
    #allocation5 [shape = 'u8[8192]{0}', space=vmem, size = 0x2000, scoped, tag = 'input window, operand 0']
    #allocation6 [shape = 's32[2]{0}', space=sflag, size = 0x8, scoped, tag = 'scoped memory for tpu_custom_call.1']
    #allocation7 [shape = 's32[2]{0}', space=sflag, size = 0x8, scoped, tag = 'scoped memory for tpu_custom_call.1']
    #allocation8 [shape = 'u8[8192]{0}', space=vmem, size = 0x2000, scoped, tag = 'input window, operand 1']
    #allocation9 [shape = 's32[2]{0}', space=sflag, size = 0x8, scoped, tag = 'scoped memory for tpu_custom_call.1']
    #allocation10 [shape = 'u8[1024]{0}', space=vmem, size = 0x400, scoped, tag = 'output window, operand 0']
    %7 = vsyncpa [#allocation6], 0
    %s8 = scalar_lea.sflag [#allocation6], 1
    %9 = vsyncpa %s8, 0
    %10 = vsyncpa [#allocation9], 0
    %s11 = scalar_lea.sflag [#allocation9], 1
    %12 = vsyncpa %s11, 0
    %13 = vsyncpa [#allocation7], 0
    %s14 = scalar_lea.sflag [#allocation7], 1
    %15 = vsyncpa %s14, 0
    loop: start=0, step=1, limit=4
    $region2: #{tpu_custom_call.1} parent=1 // loop_pre_header
      _
    $region3: #{tpu_custom_call.1} parent=1 // loop_header
      %s17 = sphi 0, %s21
      %p18 = scmp.ge.s32.totalorder %s17, 4
      %s24 = sphi 0, %s36
      %s25 = sphi 0, %s32
      %s26 = sphi 0, %s24
      %s27 = sphi 0, %s25
      %s28 = sphi 0, %s26
      %s29 = sphi 0, %s27
      %s41 = sphi 0, %s43
      %s44 = sphi 0, %s41
      %s45 = sphi 0, %s44
      %s61 = sphi 0, %s45
      %s69 = sphi 0, %s71
      %s72 = sphi 0, %s69
      %s73 = sphi 0, %s72
      %s89 = sphi 0, %s73
      %s95 = sphi 0, %s97
      %s98 = sphi 0, %s95
      %s99 = sphi 0, %s98
      %s115 = sphi 0, %s99
    $region4: #{tpu_custom_call.1} parent=1 // loop_header_branch
      %20 = sbr.rel (%p18) target = $region8
    $region5: #{tpu_custom_call.1} parent=1 // loop_body
      %s22 = ssub.s32 %s17, 1
      %s23 = ssub.s32 %s17, 2
      %s30 = sadd.s32 1, %s25
      %p31 = scmp.ge.s32.totalorder %s30, 1
      %s32 = scalar_select %p31, 0, %s30
      %s33 = sadd.s32 1, %s24
      %s34 = scalar_select %p31, %s33, %s24
      %p35 = scmp.ge.s32.totalorder %s34, 2
      %s36 = scalar_select %p35, 0, %s34
      %s37 = ssub.s32 %s24, %s36
      %s38 = ssub.s32 %s25, %s32
      %s39 = sor.u32 %s37, %s38
      %p40 = scmp.eq.s32.totalorder %s39, 0
      %s42 = sadd.s32 %s41, 1
      %s43 = scalar_select %p40, %s41, %s42
      %p46 = pneg %p40
      %p47 = scmp.eq.s32.totalorder %s17, 1
      %p48 = por %p46, %p47
      %p49 = scmp.ne.s32.totalorder %s41, %s44
      %p50 = scmp.eq.s32.totalorder %s17, 0
      %p51 = por %p49, %p50
      %p52 = scmp.ne.s32.totalorder %s41, %s44
      %p53 = scmp.eq.s32.totalorder %s22, 1
      %p54 = por %p52, %p53
      %p55 = scmp.ne.s32.totalorder %s44, %s45
      %p56 = scmp.eq.s32.totalorder %s22, 0
      %p57 = por %p55, %p56
      %p58 = scmp.ne.s32.totalorder %s44, %s45
      %p59 = scmp.eq.s32.totalorder %s23, 1
      %p60 = por %p58, %p59
      %p62 = scmp.ne.s32.totalorder %s45, %s61
      %p63 = scmp.eq.s32.totalorder %s23, 0
      %p64 = por %p62, %p63
      %s65 = ssub.s32 %s24, %s36
      %s66 = ssub.s32 %s25, %s32
      %s67 = sor.u32 %s65, %s66
      %p68 = scmp.eq.s32.totalorder %s67, 0
      %s70 = sadd.s32 %s69, 1
      %s71 = scalar_select %p68, %s69, %s70
      %p74 = pneg %p68
      %p75 = scmp.eq.s32.totalorder %s17, 1
      %p76 = por %p74, %p75
      %p77 = scmp.ne.s32.totalorder %s69, %s72
      %p78 = scmp.eq.s32.totalorder %s17, 0
      %p79 = por %p77, %p78
      %p80 = scmp.ne.s32.totalorder %s69, %s72
      %p81 = scmp.eq.s32.totalorder %s22, 1
      %p82 = por %p80, %p81
      %p83 = scmp.ne.s32.totalorder %s72, %s73
      %p84 = scmp.eq.s32.totalorder %s22, 0
      %p85 = por %p83, %p84
      %p86 = scmp.ne.s32.totalorder %s72, %s73
      %p87 = scmp.eq.s32.totalorder %s23, 1
      %p88 = por %p86, %p87
      %p90 = scmp.ne.s32.totalorder %s73, %s89
      %p91 = scmp.eq.s32.totalorder %s23, 0
      %p92 = por %p90, %p91
      %s93 = ssub.s32 %s24, %s36
      %p94 = scmp.eq.s32.totalorder %s93, 0
      %s96 = sadd.s32 %s95, 1
      %s97 = scalar_select %p94, %s95, %s96
      %p100 = pneg %p94
      %p101 = scmp.eq.s32.totalorder %s17, 1
      %p102 = por %p100, %p101
      %p103 = scmp.ne.s32.totalorder %s95, %s98
      %p104 = scmp.eq.s32.totalorder %s17, 0
      %p105 = por %p103, %p104
      %p106 = scmp.ne.s32.totalorder %s95, %s98
      %p107 = scmp.eq.s32.totalorder %s22, 1
      %p108 = por %p106, %p107
      %p109 = scmp.ne.s32.totalorder %s98, %s99
      %p110 = scmp.eq.s32.totalorder %s22, 0
      %p111 = por %p109, %p110
      %p112 = scmp.ne.s32.totalorder %s98, %s99
      %p113 = scmp.eq.s32.totalorder %s23, 1
      %p114 = por %p112, %p113
      %p116 = scmp.ne.s32.totalorder %s99, %s115
      %p117 = scmp.eq.s32.totalorder %s23, 0
      %p118 = por %p116, %p117
      %p119 = scmp.le.s32.totalorder 1, %s17
      %p120 = scmp.lt.s32.totalorder %s17, 3
      %p121 = pnand %p119, %p120
      %p122 = pneg %p121
      // Predicated region
      $region9: #{tpu_custom_call.1} parent=5 // pred_check
        _
      $region10: #{tpu_custom_call.1} parent=5 // pred_check_branch
        %124 = sbr.rel (%p121) target = $region12
      $region11: #{tpu_custom_call.1} parent=5 // pred_region
        %s125 = ssub.s32 %s17, 1
      $region12: #{tpu_custom_call.1} parent=5 // pred_fallthru
        _
      %p126 = scmp.lt.s32.totalorder %s17, 2
      // Predicated region
      $region13: #{tpu_custom_call.1} parent=5 // pred_check
        %p127 = pneg %p126
      $region14: #{tpu_custom_call.1} parent=5 // pred_check_branch
        %129 = sbr.rel (%p127) target = $region16
      $region15: #{tpu_custom_call.1} parent=5 // pred_region
        // Predicated region
        $region17: #{tpu_custom_call.1} parent=15 // pred_check
          %p130 = pneg %p51
        $region18: #{tpu_custom_call.1} parent=15 // pred_check_branch
          %132 = sbr.rel (%p130) target = $region20
        $region19: #{tpu_custom_call.1} parent=15 // pred_region
          %s133 = sand.u32 %s41, 1
          %s134 = scalar_lea.sflag [#allocation6], %s133
          %s135 = sand.u32 %s41, 1
          %s136 = smul.addr %s135, 8
          %s137 = scalar_lea.vmem [#allocation5], %s136
          %139 = vsyncadd %s134, 0
          %s140 = sadd.s32 %s25, %s24
          %s141 = smul.addr %s140, 8
          %s142 = scalar_lea.hbm %s0, %s141
          %s144 = sshll.u32 %s142, 4
          %s145 = int_to_ptr.hbm [resolvable:$true] %s144
          %s146 = sshll.u32 %s137, 4
          %s147 = int_to_ptr.vmem [resolvable:$true] %s146
          %149 = dma.hbm_to_vmem [thread:$0]  %s145, 128, %s147, %s134
        $region20: #{tpu_custom_call.1} parent=15 // pred_fallthru
          _
        // Predicated region
        $region21: #{tpu_custom_call.1} parent=15 // pred_check
          %p150 = pneg %p79
        $region22: #{tpu_custom_call.1} parent=15 // pred_check_branch
          %152 = sbr.rel (%p150) target = $region24
        $region23: #{tpu_custom_call.1} parent=15 // pred_region
          %s153 = sand.u32 %s69, 1
          %s154 = scalar_lea.sflag [#allocation9], %s153
          %s155 = sand.u32 %s69, 1
          %s156 = smul.addr %s155, 8
          %s157 = scalar_lea.vmem [#allocation8], %s156
          %159 = vsyncadd %s154, 0
          %s160 = sadd.s32 %s25, %s24
          %s161 = smul.addr %s160, 8
          %s162 = scalar_lea.hbm %s1, %s161
          %s164 = sshll.u32 %s162, 4
          %s165 = int_to_ptr.hbm [resolvable:$true] %s164
          %s166 = sshll.u32 %s157, 4
          %s167 = int_to_ptr.vmem [resolvable:$true] %s166
          %169 = dma.hbm_to_vmem [thread:$0]  %s165, 128, %s167, %s154
        $region24: #{tpu_custom_call.1} parent=15 // pred_fallthru
          _
      $region16: #{tpu_custom_call.1} parent=5 // pred_fallthru
        _
      %p170 = scmp.le.s32.totalorder 1, %s17
      %p171 = scmp.lt.s32.totalorder %s17, 3
      %p172 = pnand %p170, %p171
      %p173 = pneg %p172
      // Predicated region
      $region25: #{tpu_custom_call.1} parent=5 // pred_check
        _
      $region26: #{tpu_custom_call.1} parent=5 // pred_check_branch
        %175 = sbr.rel (%p172) target = $region28
      $region27: #{tpu_custom_call.1} parent=5 // pred_region
        %s176 = ssub.s32 %s17, 1
        %s177 = sand.u32 %s44, 1
        %s178 = scalar_lea.sflag [#allocation6], %s177
        %s179 = sand.u32 %s44, 1
        %s180 = smul.addr %s179, 8
        %s181 = scalar_lea.vmem [#allocation5], %s180
        // Predicated region
        $region29: #{tpu_custom_call.1} parent=27 // pred_check
          %p182 = pneg %p57
        $region30: #{tpu_custom_call.1} parent=27 // pred_check_branch
          %184 = sbr.rel (%p182) target = $region32
        $region31: #{tpu_custom_call.1} parent=27 // pred_region
          %186 = dma.done %s178, 128
        $region32: #{tpu_custom_call.1} parent=27 // pred_fallthru
          _
        %s187 = sand.u32 %s72, 1
        %s188 = scalar_lea.sflag [#allocation9], %s187
        %s189 = sand.u32 %s72, 1
        %s190 = smul.addr %s189, 8
        %s191 = scalar_lea.vmem [#allocation8], %s190
        // Predicated region
        $region33: #{tpu_custom_call.1} parent=27 // pred_check
          %p192 = pneg %p85
        $region34: #{tpu_custom_call.1} parent=27 // pred_check_branch
          %194 = sbr.rel (%p192) target = $region36
        $region35: #{tpu_custom_call.1} parent=27 // pred_region
          %196 = dma.done %s188, 128
        $region36: #{tpu_custom_call.1} parent=27 // pred_fallthru
          _
        %s197 = sand.u32 %s44, 1
        %s198 = scalar_lea.sflag [#allocation6], %s197
        %s199 = sand.u32 %s44, 1
        %s200 = smul.addr %s199, 8
        %s201 = scalar_lea.vmem [#allocation5], %s200
        %p202 = pneg %p57
        %p203 = pneg %p54
        %s204 = sand.u32 %s72, 1
        %s205 = scalar_lea.sflag [#allocation9], %s204
        %s206 = sand.u32 %s72, 1
        %s207 = smul.addr %s206, 8
        %s208 = scalar_lea.vmem [#allocation8], %s207
        %p209 = pneg %p85
        %p210 = pneg %p82
        %p211 = pneg %p111
        %p212 = pneg %p108
        %s213 = sand.u32 %s98, 1
        %s214 = scalar_lea.sflag [#allocation7], %s213
        %s215 = sand.u32 %s98, 1
        %s216 = scalar_lea.vmem [#allocation10], %s215
        %p217 = scmp.eq.s32.totalorder %s27, 0
        // Predicated region
        $region37: #{tpu_custom_call.1} parent=27 // pred_check
          %p218 = pneg %p217
        $region38: #{tpu_custom_call.1} parent=27 // pred_check_branch
          %220 = sbr.rel (%p218) target = $region40
        $region39: #{tpu_custom_call.1} parent=27 // pred_region
          %221 = vst [vmem:[#allocation2] sm:$0xff] 0.0
          %222 = vst [vmem:[#allocation3] sm:$0xff] 0.0
          %223 = vst [vmem:[#allocation4] sm:$0xff] 0.0
        $region40: #{tpu_custom_call.1} parent=27 // pred_fallthru
          _
        %v224 = vld [vmem:[%s181] sm:$0xff]
        %v225 = vld [vmem:[%s191] sm:$0xff]
        %v226 = vld [vmem:[#allocation2] sm:$0xff]
        %v227 = vmul.f32 %v224, %v225
        %v228 = vadd.f32 %v227, 0.0
        %v229 = vadd.f32 %v226, %v228
        %230 = vst [vmem:[#allocation2] sm:$0xff] %v229
        %v231 = vld [vmem:[#allocation3] sm:$0xff]
        %v232 = vadd.f32 %v224, 0.0
        %v233 = vadd.f32 %v231, %v232
        %234 = vst [vmem:[#allocation3] sm:$0xff] %v233
        %v235 = vld [vmem:[#allocation4] sm:$0xff]
        %v236 = vadd.f32 %v225, 0.0
        %v237 = vadd.f32 %v235, %v236
        %238 = vst [vmem:[#allocation4] sm:$0xff] %v237
        // Predicated region
        $region41: #{tpu_custom_call.1} parent=27 // pred_check
          %p239 = pneg %p217
        $region42: #{tpu_custom_call.1} parent=27 // pred_check_branch
          %241 = sbr.rel (%p239) target = $region44
        $region43: #{tpu_custom_call.1} parent=27 // pred_region
          %v242 = vld [vmem:[#allocation2] sm:$0xff]
          %243 = vadd.xlane.f32.xlu0 %v242
          %v244 = vpop.xlane.xlu0 %243
          %v245 = vrot.slane %v244, 4
          %v246 = vadd.f32 %v244, %v245
          %v247 = vrot.slane %v246, 2
          %v248 = vadd.f32 %v246, %v247
          %v249 = vrot.slane %v248, 1
          %v250 = vadd.f32 %v248, %v249
          %s251 = vtos %v250
          %v252 = vld [vmem:[#allocation3] sm:$0xff]
          %253 = vadd.xlane.f32.xlu0 %v252
          %v254 = vpop.xlane.xlu0 %253
          %v255 = vrot.slane %v254, 4
          %v256 = vadd.f32 %v254, %v255
          %v257 = vrot.slane %v256, 2
          %v258 = vadd.f32 %v256, %v257
          %v259 = vrot.slane %v258, 1
          %v260 = vadd.f32 %v258, %v259
          %s261 = vtos %v260
          %v262 = vld [vmem:[#allocation4] sm:$0xff]
          %263 = vadd.xlane.f32.xlu0 %v262
          %v264 = vpop.xlane.xlu0 %263
          %v265 = vrot.slane %v264, 4
          %v266 = vadd.f32 %v264, %v265
          %v267 = vrot.slane %v266, 2
          %v268 = vadd.f32 %v266, %v267
          %v269 = vrot.slane %v268, 1
          %v270 = vadd.f32 %v268, %v269
          %s271 = vtos %v270
          %s272 = sadd.f32 %s261, %s271
          %s273 = ssub.f32 %s272, %s251
          %s274 = sadd.f32 %s273, 1e-06
          %v275 = vstv %s274
          %v276 = vrcp.pop %v275
          %v277 = vmul.f32 %v275, %v276
          %v278 = vsub.f32 1.0, %v277
          %v279 = vmul.f32 %v276, %v278
          %v280 = vadd.f32 %v276, %v279
          %vm281 = vweird.f32 %v275
          %vm282 = vweird.f32 %v276
          %vm283 = vmor %vm281, %vm282
          %v284 = vsel %vm283, %v276, %v280
          %v285 = vand.u32 2147483647, %v275
          %vm286 = vcmp.eq.f32.partialorder %v285, 8.507059e+37
          %v287 = vand.u32 %v275, 2147483648
          %v288 = vor.u32 1.1754944e-38, %v287
          %v289 = vsel %vm286, %v288, %v284
          %s290 = vtos %v289
          %s291 = smul.f32 %s251, %s290
          %s292 = ssub.f32 1.0, %s291
          %v293 = vstv %s292
          %294 = vst [vmem:[%s216] sm:$0x1] %v293
        $region44: #{tpu_custom_call.1} parent=27 // pred_fallthru
          _
        %s295 = sand.u32 %s98, 1
        %s296 = scalar_lea.sflag [#allocation7], %s295
        %s297 = sand.u32 %s98, 1
        %s298 = scalar_lea.vmem [#allocation10], %s297
        // Predicated region
        $region45: #{tpu_custom_call.1} parent=27 // pred_check
          %p299 = pneg %p108
        $region46: #{tpu_custom_call.1} parent=27 // pred_check_branch
          %301 = sbr.rel (%p299) target = $region48
        $region47: #{tpu_custom_call.1} parent=27 // pred_region
          %303 = vsyncadd %s296, 0
          %s304 = scalar_lea.hbm %s2, %s26
          %s306 = sshll.u32 %s298, 4
          %s307 = int_to_ptr.vmem [resolvable:$true] %s306
          %s308 = sshll.u32 %s304, 4
          %s309 = int_to_ptr.hbm [resolvable:$true] %s308
          %311 = dma.vmem_to_hbm [thread:$0]  %s307, 16, %s309, %s296
        $region48: #{tpu_custom_call.1} parent=27 // pred_fallthru
          _
      $region28: #{tpu_custom_call.1} parent=5 // pred_fallthru
        _
      %p312 = scmp.le.s32.totalorder 2, %s17
      // Predicated region
      $region49: #{tpu_custom_call.1} parent=5 // pred_check
        %p313 = pneg %p312
      $region50: #{tpu_custom_call.1} parent=5 // pred_check_branch
        %315 = sbr.rel (%p313) target = $region52
      $region51: #{tpu_custom_call.1} parent=5 // pred_region
        %s316 = ssub.s32 %s17, 2
        // Predicated region
        $region53: #{tpu_custom_call.1} parent=51 // pred_check
          %p317 = pneg %p114
        $region54: #{tpu_custom_call.1} parent=51 // pred_check_branch
          %319 = sbr.rel (%p317) target = $region56
        $region55: #{tpu_custom_call.1} parent=51 // pred_region
          %s320 = sand.u32 %s99, 1
          %s321 = scalar_lea.sflag [#allocation7], %s320
          %s322 = sand.u32 %s99, 1
          %s323 = scalar_lea.vmem [#allocation10], %s322
          %325 = dma.done %s321, 16
        $region56: #{tpu_custom_call.1} parent=51 // pred_fallthru
          _
      $region52: #{tpu_custom_call.1} parent=5 // pred_fallthru
        _
    $region6: #{tpu_custom_call.1} parent=1 // loop_footer
      %s21 = sadd.s32 1, %s17
    $region7: #{tpu_custom_call.1} parent=1 // loop_footer_branch
      %16 = sbr.rel target = $region3
    $region8: #{tpu_custom_call.1} parent=1 // loop_exit
      _
    %326 = vsyncpa [#allocation6], 1
    %s327 = scalar_lea.sflag [#allocation6], 1
    %328 = vsyncpa %s327, 1
    %329 = vsyncpa [#allocation9], 1
    %s330 = scalar_lea.sflag [#allocation9], 1
    %331 = vsyncpa %s330, 1
    %332 = vsyncpa [#allocation7], 1
    %s333 = scalar_lea.sflag [#allocation7], 1
    %334 = vsyncpa %s333, 1

</llo_original>
